<compile_context>
chip_gen: v5e
topology: v5e:2x2
jax: 0.10.0
libtpu: 0.0.40
codegen_flags: <defaults>
</compile_context>

<pallas_src>
import jax
import jax.numpy as jnp
from jax.experimental import pallas as pl
from jax.experimental.pallas import tpu as pltpu


def _round_up(x, m):
    return ((x + m - 1) // m) * m


def _fused_kernel(xi_ref, w_ref, b_ref, perm_ref, o_ref):
    # xi_ref:   (1, 2, C_in, tl2)   pre-interleaved positions for the two row parities
    # w_ref:    (tco, C_in)         conv weight tile
    # b_ref:    (tco, 1)            bias tile
    # perm_ref: (2, 2*tco, tco)     0/1 row-scatter matrices (even rows / odd rows)
    # o_ref:    (1, 2*tco, tl2)     final pixel-shuffled output tile (lane-dense)
    w = w_ref[...]
    b = b_ref[...]

    def act(s):
        y = jnp.dot(w, xi_ref[0, s], preferred_element_type=jnp.float32)
        y = y + b
        return (y * jax.nn.sigmoid(y)).astype(o_ref.dtype)   # SiLU, f32 accumulation

    a0 = act(0)   # -> even output rows (2h)
    a1 = act(1)   # -> odd  output rows (2h+1)
    # Row-parity interleave on the MXU with exact 0/1 coefficients.
    z = (jnp.dot(perm_ref[0], a0, preferred_element_type=jnp.float32)
         + jnp.dot(perm_ref[1], a1, preferred_element_type=jnp.float32))
    o_ref[0] = z.astype(o_ref.dtype)


def pixel_shuffle_upsample(x, weight, bias):
    """
    x:      (N, dim, L)        NCL layout (PyTorch Conv1d convention), N % 4 == 0
    weight: (4*dim_out, dim)   kernel-size-1 Conv1d weight, squeezed
    bias:   (4*dim_out,)
    returns (N//4, 8*dim_out, 2*L)
    """
    N, C_in, L = x.shape
    C_out = weight.shape[0]
    assert N % 4 == 0, "PixelShuffle(2) on 3-D input needs leading dim divisible by 4"
    G = N // 4
    dtype = x.dtype
    esize = jnp.dtype(dtype).itemsize

    # --- pad channels to a multiple of 8 so every block stays sublane-aligned ---
    C_out_p = _round_up(C_out, 8)
    if C_out_p != C_out:
        weight = jnp.pad(weight, ((0, C_out_p - C_out), (0, 0)))
        bias = jnp.pad(bias, ((0, C_out_p - C_out),))

    # --- tile selection (VMEM-budgeted, per-generation safe) ---
    # output-channel tile: full if the weight block is small, else a bounded divisor
    if C_out_p * C_in * esize <= (2 << 20) and C_out_p <= 512:
        tco = C_out_p
    else:
        tco = 8
        for cand in (256, 128, 64, 32, 16, 8):
            if C_out_p % cand == 0:
                tco = cand
                break
    # position tile (lane axis of the output): always a multiple of 128 -> lane-dense stores
    L2p = _round_up(2 * L, 128)
    tl2 = 128
    for cand in (512, 256):
        if L2p % cand == 0 and 2 * esize * (2 * C_in + 2 * tco) * cand <= (16 << 20):
            tl2 = cand
            break
    n_co = C_out_p // tco
    n_l = L2p // tl2

    # --- lane-factor pre-interleave of the SMALL input (one cheap XLA pass over x;
    #     replaces both big transposes and the XLA pixel-shuffle over the 4x activation):
    #     xi[g, s, c, 2w + r2] = x[4g + 2s + r2, c, w]
    xi = x.reshape(G, 2, 2, C_in, L)
    xi = jnp.transpose(xi, (0, 1, 3, 4, 2)).reshape(G, 2, C_in, 2 * L)
    if L2p != 2 * L:
        xi = jnp.pad(xi, ((0, 0), (0, 0), (0, 0), (0, L2p - 2 * L)))

    # --- 0/1 row-scatter matrices: a_s[h] -> output row 2h + s ---
    rows = jnp.arange(2 * tco)
    cols = jnp.arange(tco)
    p_even = (rows[:, None] == 2 * cols[None, :]).astype(dtype)
    p_odd = (rows[:, None] == 2 * cols[None, :] + 1).astype(dtype)
    perm = jnp.stack([p_even, p_odd], axis=0)            # (2, 2*tco, tco)

    b2 = bias.reshape(C_out_p, 1)

    # --- VMEM budget / cost model ---
    est = 2 * esize * (2 * C_in * tl2        # xi block (double-buffered)
                       + tco * C_in          # weight block
                       + tco                 # bias block
                       + 4 * tco * tco       # permutation block
                       + 2 * tco * tl2)      # output block
    vmem_limit = int(min(max(est + (8 << 20), 32 << 20), 48 << 20))

    flops_main = 4 * G * C_out_p * C_in * L2p
    flops_perm = 8 * G * C_out_p * tco * L2p
    transc = 2 * G * C_out_p * L2p
    bytes_accessed = esize * (xi.size + weight.size + b2.size + perm.size
                              + G * 2 * C_out_p * L2p)

    fn = pl.pallas_call(
        _fused_kernel,
        out_shape=jax.ShapeDtypeStruct((G, 2 * C_out_p, L2p), dtype),
        grid_spec=pltpu.PrefetchScalarGridSpec(
            num_scalar_prefetch=0,
            grid=(G, n_co, n_l),
            in_specs=[
                pl.BlockSpec((1, 2, C_in, tl2), lambda g, co, l: (g, 0, 0, l)),
                pl.BlockSpec((tco, C_in), lambda g, co, l: (co, 0)),
                pl.BlockSpec((tco, 1), lambda g, co, l: (co, 0)),
                pl.BlockSpec((2, 2 * tco, tco), lambda g, co, l: (0, 0, 0)),
            ],
            out_specs=pl.BlockSpec((1, 2 * tco, tl2), lambda g, co, l: (g, co, l)),
        ),
        compiler_params=pltpu.CompilerParams(
            dimension_semantics=("parallel", "parallel", "arbitrary"),
            vmem_limit_bytes=vmem_limit,
        ),
        cost_estimate=pl.CostEstimate(
            flops=int(flops_main + flops_perm),
            transcendentals=int(transc),
            bytes_accessed=int(bytes_accessed),
        ),
    )
    out = fn(xi, weight, b2, perm)
    # drop channel / position padding
    return out[:, : 2 * C_out, : 2 * L]


def init_params(key, dim, dim_out=None):
    dim_out = dim if dim_out is None else dim_out
    # kaiming_uniform_ on (dim_out, dim, 1): bound = sqrt(6 / fan_in), fan_in = dim
    bound = (6.0 / dim) ** 0.5
    base = jax.random.uniform(key, (dim_out, dim), jnp.float32, -bound, bound)
    weight = jnp.repeat(base, 4, axis=0)                  # 'o ... -> (o 4) ...'
    bias = jnp.zeros((4 * dim_out,), jnp.float32)
    return weight, bias


def _reference(x, weight, bias):
    y = jnp.einsum("ncl,oc->nol", x, weight) + bias[None, :, None]
    y = y * jax.nn.sigmoid(y)
    N, O, L = y.shape
    y = y.reshape(N // 4, 2, 2, O, L).transpose(0, 3, 1, 4, 2)
    return y.reshape(N // 4, O * 2, L * 2)


if __name__ == "__main__":
    key = jax.random.PRNGKey(0)
    k_x, k_w = jax.random.split(key)

    N, dim, L = 8, 16, 16          # small demo shapes; N divisible by 4
    x = jax.random.normal(k_x, (N, dim, L), jnp.float32)
    weight, bias = init_params(k_w, dim)

    out = pixel_shuffle_upsample(x, weight, bias)
    out = jax.block_until_ready(out)

    ref = _reference(x, weight, bias)
    assert out.shape == (N // 4, 8 * dim, 2 * L), out.shape
    assert jnp.allclose(out, ref, atol=5e-5, rtol=5e-5)

    print("KERNEL_OK")
</pallas_src>

<mosaic_0001>
module attributes {stable_mosaic.version = 11 : i64} {
  func.func @_fused_kernel(%arg0: i32, %arg1: i32, %arg2: i32, %arg3: memref<1x2x16x128xf32, #tpu.memory_space<vmem>>, %arg4: memref<64x16xf32, #tpu.memory_space<vmem>>, %arg5: memref<64x1xf32, #tpu.memory_space<vmem>>, %arg6: memref<2x128x64xf32, #tpu.memory_space<vmem>>, %arg7: memref<1x128x128xf32, #tpu.memory_space<vmem>>) attributes {dimension_semantics = [#tpu.dimension_semantics<parallel>, #tpu.dimension_semantics<parallel>, #tpu.dimension_semantics<arbitrary>], iteration_bounds = array<i64: 2, 1, 1>, scalar_prefetch = 0 : i64, scratch_operands = 0 : i64, tpu.core_type = #tpu.core_type<tc>, window_params = [{transform_indices = @transform_0, window_bounds = array<i64: 1, 2, 16, 128>}, {transform_indices = @transform_1, window_bounds = array<i64: 64, 16>}, {transform_indices = @transform_2, window_bounds = array<i64: 64, 1>}, {pipeline_mode = #tpu.pipeline_mode<synchronous>, transform_indices = @transform_3, window_bounds = array<i64: 2, 128, 64>}, {transform_indices = @transform_4, window_bounds = array<i64: 1, 128, 128>}]} {
    %c0 = arith.constant 0 : index
    %c0_0 = arith.constant 0 : index
    %0 = vector.load %arg4[%c0, %c0_0] : memref<64x16xf32, #tpu.memory_space<vmem>>, vector<64x16xf32>
    %c0_1 = arith.constant 0 : index
    %c0_2 = arith.constant 0 : index
    %1 = vector.load %arg5[%c0_1, %c0_2] : memref<64x1xf32, #tpu.memory_space<vmem>>, vector<64x1xf32>
    %c0_3 = arith.constant 0 : index
    %c0_4 = arith.constant 0 : index
    %c0_5 = arith.constant 0 : index
    %c0_6 = arith.constant 0 : index
    %2 = vector.load %arg3[%c0_3, %c0_4, %c0_5, %c0_6] : memref<1x2x16x128xf32, #tpu.memory_space<vmem>>, vector<1x1x16x128xf32>
    %3 = vector.shape_cast %2 : vector<1x1x16x128xf32> to vector<16x128xf32>
    %cst = arith.constant dense<0.000000e+00> : vector<64x128xf32>
    %4 = tpu.matmul %0, %3, %cst {dimension_numbers = #tpu.dot_dimension_numbers<[1], [0], [0], [1], [0, 0, 1, 1], [], []>} : vector<64x16xf32>, vector<16x128xf32>, vector<64x128xf32> -> vector<64x128xf32>
    %5 = vector.broadcast %1 : vector<64x1xf32> to vector<64x128xf32>
    %6 = arith.addf %4, %5 : vector<64x128xf32>
    %7 = arith.negf %6 : vector<64x128xf32>
    %8 = math.exp %7 : vector<64x128xf32>
    %cst_7 = arith.constant 1.000000e+00 : f32
    %9 = vector.broadcast %cst_7 : f32 to vector<64x128xf32>
    %10 = arith.addf %9, %8 : vector<64x128xf32>
    %11 = arith.divf %9, %10 : vector<64x128xf32>
    %12 = arith.mulf %6, %11 : vector<64x128xf32>
    %c0_8 = arith.constant 0 : index
    %c1 = arith.constant 1 : index
    %c0_9 = arith.constant 0 : index
    %c0_10 = arith.constant 0 : index
    %13 = vector.load %arg3[%c0_8, %c1, %c0_9, %c0_10] : memref<1x2x16x128xf32, #tpu.memory_space<vmem>>, vector<1x1x16x128xf32>
    %14 = vector.shape_cast %13 : vector<1x1x16x128xf32> to vector<16x128xf32>
    %cst_11 = arith.constant dense<0.000000e+00> : vector<64x128xf32>
    %15 = tpu.matmul %0, %14, %cst_11 {dimension_numbers = #tpu.dot_dimension_numbers<[1], [0], [0], [1], [0, 0, 1, 1], [], []>} : vector<64x16xf32>, vector<16x128xf32>, vector<64x128xf32> -> vector<64x128xf32>
    %16 = vector.broadcast %1 : vector<64x1xf32> to vector<64x128xf32>
    %17 = arith.addf %15, %16 : vector<64x128xf32>
    %18 = arith.negf %17 : vector<64x128xf32>
    %19 = math.exp %18 : vector<64x128xf32>
    %cst_12 = arith.constant 1.000000e+00 : f32
    %20 = vector.broadcast %cst_12 : f32 to vector<64x128xf32>
    %21 = arith.addf %20, %19 : vector<64x128xf32>
    %22 = arith.divf %20, %21 : vector<64x128xf32>
    %23 = arith.mulf %17, %22 : vector<64x128xf32>
    %c0_13 = arith.constant 0 : index
    %c0_14 = arith.constant 0 : index
    %c0_15 = arith.constant 0 : index
    %24 = vector.load %arg6[%c0_13, %c0_14, %c0_15] : memref<2x128x64xf32, #tpu.memory_space<vmem>>, vector<1x128x64xf32>
    %25 = vector.shape_cast %24 : vector<1x128x64xf32> to vector<128x64xf32>
    %cst_16 = arith.constant dense<0.000000e+00> : vector<128x128xf32>
    %26 = tpu.matmul %25, %12, %cst_16 {dimension_numbers = #tpu.dot_dimension_numbers<[1], [0], [0], [1], [0, 0, 1, 1], [], []>} : vector<128x64xf32>, vector<64x128xf32>, vector<128x128xf32> -> vector<128x128xf32>
    %c1_17 = arith.constant 1 : index
    %c0_18 = arith.constant 0 : index
    %c0_19 = arith.constant 0 : index
    %27 = vector.load %arg6[%c1_17, %c0_18, %c0_19] : memref<2x128x64xf32, #tpu.memory_space<vmem>>, vector<1x128x64xf32>
    %28 = vector.shape_cast %27 : vector<1x128x64xf32> to vector<128x64xf32>
    %cst_20 = arith.constant dense<0.000000e+00> : vector<128x128xf32>
    %29 = tpu.matmul %28, %23, %cst_20 {dimension_numbers = #tpu.dot_dimension_numbers<[1], [0], [0], [1], [0, 0, 1, 1], [], []>} : vector<128x64xf32>, vector<64x128xf32>, vector<128x128xf32> -> vector<128x128xf32>
    %30 = arith.addf %26, %29 : vector<128x128xf32>
    %c0_21 = arith.constant 0 : index
    %c0_22 = arith.constant 0 : index
    %c0_23 = arith.constant 0 : index
    %31 = vector.load %arg7[%c0_21, %c0_22, %c0_23] : memref<1x128x128xf32, #tpu.memory_space<vmem>>, vector<1x128x128xf32>
    %32 = vector.shape_cast %31 : vector<1x128x128xf32> to vector<128x128xf32>
    %33 = vector.shape_cast %30 : vector<128x128xf32> to vector<1x128x128xf32>
    tpu.vector_store %arg7[%c0_21, %c0_22, %c0_23], %33 {strides = array<i32>} : memref<1x128x128xf32, #tpu.memory_space<vmem>>, vector<1x128x128xf32>,
    return
  }
  func.func @transform_0(%arg0: i32, %arg1: i32, %arg2: i32) -> (i32, i32, i32, i32) {
    %c0_i32 = arith.constant 0 : i32
    %c0_i32_0 = arith.constant 0 : i32
    %c0_i32_1 = arith.constant 0 : i32
    return %arg0, %c0_i32, %c0_i32_0, %arg2 : i32, i32, i32, i32
  }
  func.func @transform_1(%arg0: i32, %arg1: i32, %arg2: i32) -> (i32, i32) {
    %c0_i32 = arith.constant 0 : i32
    %c0_i32_0 = arith.constant 0 : i32
    return %arg1, %c0_i32 : i32, i32
  }
  func.func @transform_2(%arg0: i32, %arg1: i32, %arg2: i32) -> (i32, i32) {
    %c0_i32 = arith.constant 0 : i32
    %c0_i32_0 = arith.constant 0 : i32
    return %arg1, %c0_i32 : i32, i32
  }
  func.func @transform_3(%arg0: i32, %arg1: i32, %arg2: i32) -> (i32, i32, i32) {
    %c0_i32 = arith.constant 0 : i32
    %c0_i32_0 = arith.constant 0 : i32
    %c0_i32_1 = arith.constant 0 : i32
    %c0_i32_2 = arith.constant 0 : i32
    return %c0_i32, %c0_i32_0, %c0_i32_1 : i32, i32, i32
  }
  func.func @transform_4(%arg0: i32, %arg1: i32, %arg2: i32) -> (i32, i32, i32) {
    %c0_i32 = arith.constant 0 : i32
    return %arg0, %arg1, %arg2 : i32, i32, i32
  }
}

</mosaic_0001>

<llo_original>
// kernel: tpu_custom_call.1
$region0: #{tpu_custom_call.1}
  #allocation0 [shape = 'u32[]', space=smem, size = 0x4, offset = 0x4, fixed_abs, tag = 'smem constant byte address 0x4 - core index']
  #allocation1 [shape = 'u32[72,128]{1,0:T(1,128)}', space=vmem, size = 0x9000, scoped, tag = 'internal scratch']
  %s0 = inlined_call_operand.vmem [shape: f32[2,2,16,128], index: 0, kind: input, shape index: {}]
  %s1 = inlined_call_operand.vmem [shape: f32[64,16], index: 1, kind: input, shape index: {}]
  %s2 = inlined_call_operand.vmem [shape: f32[64,1], index: 2, kind: input, shape index: {}]
  %s3 = inlined_call_operand.vmem [shape: f32[2,128,64], index: 3, kind: input, shape index: {}]
  %s4 = inlined_call_operand.hbm [shape: f32[2,128,128], index: 4, kind: output, shape index: {}]
  %s5 = sld [smem:[#allocation0]]
  $region49: #{tpu_custom_call.1} parent=0
    _
  %s7 = ssub.s32 1, %s5
  %s8 = scalar_select 0, %s7, %s5
  $region1: #{tpu_custom_call.1} parent=0
    #allocation2 [shape = 'u8[131072]{0}', space=vmem, size = 0x20000, scoped, tag = 'output window, operand 0']
    #allocation3 [shape = 's32[2]{0}', space=sflag, size = 0x8, scoped, tag = 'scoped memory for tpu_custom_call.1']
    %9 = vsyncpa [#allocation3], 0
    %s10 = scalar_lea.sflag [#allocation3], 1
    %11 = vsyncpa %s10, 0
    loop: start=0, step=1, limit=4
    $region2: #{tpu_custom_call.1} parent=1 // loop_pre_header
      _
    $region3: #{tpu_custom_call.1} parent=1 // loop_header
      %s13 = sphi 0, %s17
      %p14 = scmp.ge.s32.totalorder %s13, 4
      %s20 = sphi 0, %s39
      %s21 = sphi 0, %s35
      %s22 = sphi 0, %s31
      %s23 = sphi 0, %s20
      %s24 = sphi 0, %s21
      %s25 = sphi 0, %s22
      %s26 = sphi 0, %s23
      %s27 = sphi 0, %s24
      %s28 = sphi 0, %s25
      %s44 = sphi 0, %s46
      %s47 = sphi 0, %s44
      %s48 = sphi 0, %s47
      %s64 = sphi 0, %s48
      %s70 = sphi 0, %s72
      %s73 = sphi 0, %s70
      %s74 = sphi 0, %s73
      %s90 = sphi 0, %s74
      %s96 = sphi 0, %s98
      %s99 = sphi 0, %s96
      %s100 = sphi 0, %s99
      %s116 = sphi 0, %s100
      %s120 = sphi 0, %s120
      %s122 = sphi 0, %s120
      %s123 = sphi 0, %s122
      %s137 = sphi 0, %s123
      %s147 = sphi 0, %s149
      %s150 = sphi 0, %s147
      %s151 = sphi 0, %s150
      %s167 = sphi 0, %s151
    $region4: #{tpu_custom_call.1} parent=1 // loop_header_branch
      %16 = sbr.rel (%p14) target = $region8
    $region5: #{tpu_custom_call.1} parent=1 // loop_body
      %s18 = ssub.s32 %s13, 1
      %s19 = ssub.s32 %s13, 2
      %s29 = sadd.s32 1, %s22
      %p30 = scmp.ge.s32.totalorder %s29, 1
      %s31 = scalar_select %p30, 0, %s29
      %s32 = sadd.s32 1, %s21
      %s33 = scalar_select %p30, %s32, %s21
      %p34 = scmp.ge.s32.totalorder %s33, 1
      %s35 = scalar_select %p34, 0, %s33
      %s36 = sadd.s32 1, %s20
      %s37 = scalar_select %p34, %s36, %s20
      %p38 = scmp.ge.s32.totalorder %s37, 2
      %s39 = scalar_select %p38, 0, %s37
      %s40 = ssub.s32 %s20, %s39
      %s41 = ssub.s32 %s22, %s31
      %s42 = sor.u32 %s40, %s41
      %p43 = scmp.eq.s32.totalorder %s42, 0
      %s45 = sadd.s32 %s44, 1
      %s46 = scalar_select %p43, %s44, %s45
      %p49 = pneg %p43
      %p50 = scmp.eq.s32.totalorder %s13, 1
      %p51 = por %p49, %p50
      %p52 = scmp.ne.s32.totalorder %s44, %s47
      %p53 = scmp.eq.s32.totalorder %s13, 0
      %p54 = por %p52, %p53
      %p55 = scmp.ne.s32.totalorder %s44, %s47
      %p56 = scmp.eq.s32.totalorder %s18, 1
      %p57 = por %p55, %p56
      %p58 = scmp.ne.s32.totalorder %s47, %s48
      %p59 = scmp.eq.s32.totalorder %s18, 0
      %p60 = por %p58, %p59
      %p61 = scmp.ne.s32.totalorder %s47, %s48
      %p62 = scmp.eq.s32.totalorder %s19, 1
      %p63 = por %p61, %p62
      %p65 = scmp.ne.s32.totalorder %s48, %s64
      %p66 = scmp.eq.s32.totalorder %s19, 0
      %p67 = por %p65, %p66
      %s68 = ssub.s32 %s21, %s35
      %p69 = scmp.eq.s32.totalorder %s68, 0
      %s71 = sadd.s32 %s70, 1
      %s72 = scalar_select %p69, %s70, %s71
      %p75 = pneg %p69
      %p76 = scmp.eq.s32.totalorder %s13, 1
      %p77 = por %p75, %p76
      %p78 = scmp.ne.s32.totalorder %s70, %s73
      %p79 = scmp.eq.s32.totalorder %s13, 0
      %p80 = por %p78, %p79
      %p81 = scmp.ne.s32.totalorder %s70, %s73
      %p82 = scmp.eq.s32.totalorder %s18, 1
      %p83 = por %p81, %p82
      %p84 = scmp.ne.s32.totalorder %s73, %s74
      %p85 = scmp.eq.s32.totalorder %s18, 0
      %p86 = por %p84, %p85
      %p87 = scmp.ne.s32.totalorder %s73, %s74
      %p88 = scmp.eq.s32.totalorder %s19, 1
      %p89 = por %p87, %p88
      %p91 = scmp.ne.s32.totalorder %s74, %s90
      %p92 = scmp.eq.s32.totalorder %s19, 0
      %p93 = por %p91, %p92
      %s94 = ssub.s32 %s21, %s35
      %p95 = scmp.eq.s32.totalorder %s94, 0
      %s97 = sadd.s32 %s96, 1
      %s98 = scalar_select %p95, %s96, %s97
      %p101 = pneg %p95
      %p102 = scmp.eq.s32.totalorder %s13, 1
      %p103 = por %p101, %p102
      %p104 = scmp.ne.s32.totalorder %s96, %s99
      %p105 = scmp.eq.s32.totalorder %s13, 0
      %p106 = por %p104, %p105
      %p107 = scmp.ne.s32.totalorder %s96, %s99
      %p108 = scmp.eq.s32.totalorder %s18, 1
      %p109 = por %p107, %p108
      %p110 = scmp.ne.s32.totalorder %s99, %s100
      %p111 = scmp.eq.s32.totalorder %s18, 0
      %p112 = por %p110, %p111
      %p113 = scmp.ne.s32.totalorder %s99, %s100
      %p114 = scmp.eq.s32.totalorder %s19, 1
      %p115 = por %p113, %p114
      %p117 = scmp.ne.s32.totalorder %s100, %s116
      %p118 = scmp.eq.s32.totalorder %s19, 0
      %p119 = por %p117, %p118
      %s121 = sadd.s32 %s120, 1
      %p124 = scmp.eq.s32.totalorder %s13, 1
      %p125 = scmp.ne.s32.totalorder %s120, %s122
      %p126 = scmp.eq.s32.totalorder %s13, 0
      %p127 = por %p125, %p126
      %p128 = scmp.ne.s32.totalorder %s120, %s122
      %p129 = scmp.eq.s32.totalorder %s18, 1
      %p130 = por %p128, %p129
      %p131 = scmp.ne.s32.totalorder %s122, %s123
      %p132 = scmp.eq.s32.totalorder %s18, 0
      %p133 = por %p131, %p132
      %p134 = scmp.ne.s32.totalorder %s122, %s123
      %p135 = scmp.eq.s32.totalorder %s19, 1
      %p136 = por %p134, %p135
      %p138 = scmp.ne.s32.totalorder %s123, %s137
      %p139 = scmp.eq.s32.totalorder %s19, 0
      %p140 = por %p138, %p139
      %s141 = ssub.s32 %s20, %s39
      %s142 = ssub.s32 %s21, %s35
      %s143 = sor.u32 %s141, %s142
      %s144 = ssub.s32 %s22, %s31
      %s145 = sor.u32 %s143, %s144
      %p146 = scmp.eq.s32.totalorder %s145, 0
      %s148 = sadd.s32 %s147, 1
      %s149 = scalar_select %p146, %s147, %s148
      %p152 = pneg %p146
      %p153 = scmp.eq.s32.totalorder %s13, 1
      %p154 = por %p152, %p153
      %p155 = scmp.ne.s32.totalorder %s147, %s150
      %p156 = scmp.eq.s32.totalorder %s13, 0
      %p157 = por %p155, %p156
      %p158 = scmp.ne.s32.totalorder %s147, %s150
      %p159 = scmp.eq.s32.totalorder %s18, 1
      %p160 = por %p158, %p159
      %p161 = scmp.ne.s32.totalorder %s150, %s151
      %p162 = scmp.eq.s32.totalorder %s18, 0
      %p163 = por %p161, %p162
      %p164 = scmp.ne.s32.totalorder %s150, %s151
      %p165 = scmp.eq.s32.totalorder %s19, 1
      %p166 = por %p164, %p165
      %p168 = scmp.ne.s32.totalorder %s151, %s167
      %p169 = scmp.eq.s32.totalorder %s19, 0
      %p170 = por %p168, %p169
      %p171 = scmp.le.s32.totalorder 1, %s13
      %p172 = scmp.lt.s32.totalorder %s13, 3
      %p173 = pnand %p171, %p172
      %p174 = pneg %p173
      // Predicated region
      $region9: #{tpu_custom_call.1} parent=5 // pred_check
        _
      $region10: #{tpu_custom_call.1} parent=5 // pred_check_branch
        %176 = sbr.rel (%p173) target = $region12
      $region11: #{tpu_custom_call.1} parent=5 // pred_region
        %s177 = ssub.s32 %s13, 1
        // Predicated region
        $region13: #{tpu_custom_call.1} parent=11 // pred_check
          %p178 = pneg %p86
        $region14: #{tpu_custom_call.1} parent=11 // pred_check_branch
          %180 = sbr.rel (%p178) target = $region16
        $region15: #{tpu_custom_call.1} parent=11 // pred_region
          %s181 = smul.u32 8, %s24
          %p182 = scmp.lt.s32.totalorder %s181, 7
          %s183 = scalar_select %p182, %s181, 7
          %s184 = smul.addr %s183, 8
          %s185 = scalar_lea.vmem %s1, %s184
          %s186 = smul.u32 8, %s24
        $region16: #{tpu_custom_call.1} parent=11 // pred_fallthru
          _
        // Predicated region
        $region17: #{tpu_custom_call.1} parent=11 // pred_check
          %p187 = pneg %p112
        $region18: #{tpu_custom_call.1} parent=11 // pred_check_branch
          %189 = sbr.rel (%p187) target = $region20
        $region19: #{tpu_custom_call.1} parent=11 // pred_region
          %s190 = smul.u32 8, %s24
          %p191 = scmp.lt.s32.totalorder %s190, 7
          %s192 = scalar_select %p191, %s190, 7
          %s193 = smul.addr %s192, 8
          %s194 = scalar_lea.vmem %s2, %s193
          %s195 = smul.u32 8, %s24
        $region20: #{tpu_custom_call.1} parent=11 // pred_fallthru
          _
        // Predicated region
        $region21: #{tpu_custom_call.1} parent=11 // pred_check
          %p196 = pneg %p133
        $region22: #{tpu_custom_call.1} parent=11 // pred_check_branch
          %198 = sbr.rel (%p196) target = $region24
        $region23: #{tpu_custom_call.1} parent=11 // pred_region
          _
        $region24: #{tpu_custom_call.1} parent=11 // pred_fallthru
          _
      $region12: #{tpu_custom_call.1} parent=5 // pred_fallthru
        _
      %p199 = scmp.lt.s32.totalorder %s13, 2
      // Predicated region
      $region25: #{tpu_custom_call.1} parent=5 // pred_check
        %p200 = pneg %p199
      $region26: #{tpu_custom_call.1} parent=5 // pred_check_branch
        %202 = sbr.rel (%p200) target = $region28
      $region27: #{tpu_custom_call.1} parent=5 // pred_region
        // Predicated region
        $region29: #{tpu_custom_call.1} parent=27 // pred_check
          %p203 = pneg %p54
        $region30: #{tpu_custom_call.1} parent=27 // pred_check_branch
          %205 = sbr.rel (%p203) target = $region32
        $region31: #{tpu_custom_call.1} parent=27 // pred_region
          %p206 = scmp.lt.s32.totalorder %s20, 1
          %s207 = scalar_select %p206, %s20, 1
          %p208 = scmp.lt.s32.totalorder %s22, 0
          %s209 = scalar_select %p208, %s22, 0
          %s210 = smul.addr %s207, 4
          %s211 = sadd.s32 %s209, %s210
          %s212 = smul.addr %s211, 8
          %s213 = scalar_lea.vmem %s0, %s212
        $region32: #{tpu_custom_call.1} parent=27 // pred_fallthru
          _
      $region28: #{tpu_custom_call.1} parent=5 // pred_fallthru
        _
      %p214 = scmp.le.s32.totalorder 1, %s13
      %p215 = scmp.lt.s32.totalorder %s13, 3
      %p216 = pnand %p214, %p215
      %p217 = pneg %p216
      // Predicated region
      $region33: #{tpu_custom_call.1} parent=5 // pred_check
        _
      $region34: #{tpu_custom_call.1} parent=5 // pred_check_branch
        %219 = sbr.rel (%p216) target = $region36
      $region35: #{tpu_custom_call.1} parent=5 // pred_region
        %s220 = ssub.s32 %s13, 1
        %p221 = scmp.lt.s32.totalorder %s23, 1
        %s222 = scalar_select %p221, %s23, 1
        %p223 = scmp.lt.s32.totalorder %s25, 0
        %s224 = scalar_select %p223, %s25, 0
        %s225 = smul.addr %s222, 4
        %s226 = sadd.s32 %s224, %s225
        %s227 = smul.addr %s226, 8
        %s228 = scalar_lea.vmem %s0, %s227
        %p229 = pneg %p60
        %p230 = pneg %p57
        %s231 = smul.u32 8, %s24
        %p232 = scmp.lt.s32.totalorder %s231, 7
        %s233 = scalar_select %p232, %s231, 7
        %s234 = smul.addr %s233, 8
        %s235 = scalar_lea.vmem %s1, %s234
        %p236 = pneg %p86
        %p237 = pneg %p83
        %s238 = smul.u32 8, %s24
        %p239 = scmp.lt.s32.totalorder %s238, 7
        %s240 = scalar_select %p239, %s238, 7
        %s241 = smul.addr %s240, 8
        %s242 = scalar_lea.vmem %s2, %s241
        %p243 = pneg %p112
        %p244 = pneg %p109
        %p245 = pneg %p133
        %p246 = pneg %p130
        %p247 = pneg %p163
        %p248 = pneg %p160
        %s249 = sand.u32 %s150, 1
        %s250 = scalar_lea.sflag [#allocation3], %s249
        %s251 = sand.u32 %s150, 1
        %s252 = smul.addr %s251, 128
        %s253 = scalar_lea.vmem [#allocation2], %s252
        %p254 = scmp.lt.s32.totalorder %s23, 1
        %s255 = scalar_select %p254, %s23, 1
        %p256 = scmp.lt.s32.totalorder %s25, 0
        %s257 = scalar_select %p256, %s25, 0
        %s258 = smul.addr %s255, 4
        %s259 = sadd.s32 %s257, %s258
        %s260 = smul.addr %s259, 8
        %s261 = scalar_lea.vmem %s0, %s260
        %s262 = smul.u32 8, %s24
        %p263 = scmp.lt.s32.totalorder %s262, 7
        %s264 = scalar_select %p263, %s262, 7
        %s265 = smul.addr %s264, 8
        %s266 = scalar_lea.vmem %s1, %s265
        %s267 = smul.u32 8, %s24
        %s268 = smul.u32 8, %s24
        %p269 = scmp.lt.s32.totalorder %s268, 7
        %s270 = scalar_select %p269, %s268, 7
        %s271 = smul.addr %s270, 8
        %s272 = scalar_lea.vmem %s2, %s271
        %s273 = smul.u32 8, %s24
        %s274 = smul.u32 16, %s24
        %v275 = vld [vmem:[%s266] sm:$0xff]
        %v276 = vld [vmem:[%s266 + $0x8] sm:$0xff]
        %v277 = vld [vmem:[%s266 + $0x10] sm:$0xff]
        %v278 = vld [vmem:[%s266 + $0x18] sm:$0xff]
        %v279 = vld [vmem:[%s266 + $0x20] sm:$0xff]
        %v280 = vld [vmem:[%s266 + $0x28] sm:$0xff]
        %v281 = vld [vmem:[%s266 + $0x30] sm:$0xff]
        %v282 = vld [vmem:[%s266 + $0x38] sm:$0xff]
        %v283 = vld [vmem:[%s272] sm:$0xff]
        %v284 = vld [vmem:[%s272 + $0x8] sm:$0xff]
        %v285 = vld [vmem:[%s272 + $0x10] sm:$0xff]
        %v286 = vld [vmem:[%s272 + $0x18] sm:$0xff]
        %v287 = vld [vmem:[%s272 + $0x20] sm:$0xff]
        %v288 = vld [vmem:[%s272 + $0x28] sm:$0xff]
        %v289 = vld [vmem:[%s272 + $0x30] sm:$0xff]
        %v290 = vld [vmem:[%s272 + $0x38] sm:$0xff]
        %v291 = vld [vmem:[%s261] sm:$0xff]
        %v292 = vld [vmem:[%s261 + $0x8] sm:$0xff]
        %294 = vset.pattern.permute.xlu0 0
        %295 = vperm.xlu0 %294, %v283
        %v296 = vpop.permute.xlu0 %295
        %299 = vset.pattern.permute.xlu0 0
        %300 = vperm.xlu0 %299, %v284
        %v301 = vpop.permute.xlu0 %300
        %304 = vset.pattern.permute.xlu0 0
        %305 = vperm.xlu0 %304, %v285
        %v306 = vpop.permute.xlu0 %305
        %309 = vset.pattern.permute.xlu0 0
        %310 = vperm.xlu0 %309, %v286
        %v311 = vpop.permute.xlu0 %310
        %314 = vset.pattern.permute.xlu0 0
        %315 = vperm.xlu0 %314, %v287
        %v316 = vpop.permute.xlu0 %315
        %319 = vset.pattern.permute.xlu0 0
        %320 = vperm.xlu0 %319, %v288
        %v321 = vpop.permute.xlu0 %320
        %324 = vset.pattern.permute.xlu0 0
        %325 = vperm.xlu0 %324, %v289
        %v326 = vpop.permute.xlu0 %325
        %329 = vset.pattern.permute.xlu0 0
        %330 = vperm.xlu0 %329, %v290
        %v331 = vpop.permute.xlu0 %330
        %vm333 = vcmask 130048
        %v335 = vsel %vm333, %v275, 0
        %v338 = vsel %vm333, %v276, 0
        %v341 = vsel %vm333, %v277, 0
        %v344 = vsel %vm333, %v278, 0
        %v347 = vsel %vm333, %v279, 0
        %v350 = vsel %vm333, %v280, 0
        %v353 = vsel %vm333, %v281, 0
        %v356 = vsel %vm333, %v282, 0
        %358 = vmatpush.msra.mxu0 0.0
        %359 = vmatpush.msra.mxu0 0.0
        %360 = vmatpush.msra.mxu0 0.0
        %361 = vmatpush.msra.mxu0 0.0
        %362 = vmatpush.msra.mxu0 0.0
        %363 = vmatpush.msra.mxu0 0.0
        %364 = vmatpush.msra.mxu0 0.0
        %365 = vmatpush.msra.mxu0 0.0
        %366 = vmatpush.msra.mxu0 0.0
        %367 = vmatpush.msra.mxu0 0.0
        %368 = vmatpush.msra.mxu0 0.0
        %369 = vmatpush.msra.mxu0 0.0
        %370 = vmatpush.msra.mxu0 0.0
        %371 = vmatpush.msra.mxu0 0.0
        %372 = vmatpush.msra.mxu0 %v292
        %373 = vmatpush.msra.mxu0 %v291
        %374 = vmatmul.f32.gmra.mxu0 %v335
        %v375 = vpop.f32.mrf.mxu0
        %v376 = vadd.f32 %v296, %v375
        %377 = vmatmul.f32.gmra.mxu0 %v338
        %v378 = vpop.f32.mrf.mxu0
        %v379 = vadd.f32 %v301, %v378
        %380 = vmatmul.f32.gmra.mxu0 %v341
        %v381 = vpop.f32.mrf.mxu0
        %v382 = vadd.f32 %v306, %v381
        %383 = vmatmul.f32.gmra.mxu0 %v344
        %v384 = vpop.f32.mrf.mxu0
        %v385 = vadd.f32 %v311, %v384
        %386 = vmatmul.f32.gmra.mxu0 %v347
        %v387 = vpop.f32.mrf.mxu0
        %v388 = vadd.f32 %v316, %v387
        %389 = vmatmul.f32.gmra.mxu0 %v350
        %v390 = vpop.f32.mrf.mxu0
        %v391 = vadd.f32 %v321, %v390
        %392 = vmatmul.f32.gmra.mxu0 %v353
        %v393 = vpop.f32.mrf.mxu0
        %v394 = vadd.f32 %v326, %v393
        %395 = vmatmul.f32.gmra.mxu0 %v356
        %v396 = vpop.f32.mrf.mxu0
        %v397 = vadd.f32 %v331, %v396
        %398 = vdwg.mxu0
        %v399 = vxor.u32 %v376, 2147483648
        %v400 = vxor.u32 %v379, 2147483648
        %v401 = vxor.u32 %v382, 2147483648
        %v402 = vxor.u32 %v385, 2147483648
        %v403 = vxor.u32 %v388, 2147483648
        %v404 = vxor.u32 %v391, 2147483648
        %v405 = vxor.u32 %v394, 2147483648
        %v406 = vxor.u32 %v397, 2147483648
        %v407 = vmul.f32 %v399, 1.442695
        %v408 = vpow.pop %v407
        %v409 = vmul.f32 %v400, 1.442695
        %v410 = vpow.pop %v409
        %v411 = vmul.f32 %v401, 1.442695
        %v412 = vpow.pop %v411
        %v413 = vmul.f32 %v402, 1.442695
        %v414 = vpow.pop %v413
        %v415 = vmul.f32 %v403, 1.442695
        %v416 = vpow.pop %v415
        %v417 = vmul.f32 %v404, 1.442695
        %v418 = vpow.pop %v417
        %v419 = vmul.f32 %v405, 1.442695
        %v420 = vpow.pop %v419
        %v421 = vmul.f32 %v406, 1.442695
        %v422 = vpow.pop %v421
        %v423 = vadd.f32 %v408, 1.0
        %v424 = vadd.f32 %v410, 1.0
        %v425 = vadd.f32 %v412, 1.0
        %v426 = vadd.f32 %v414, 1.0
        %v427 = vadd.f32 %v416, 1.0
        %v428 = vadd.f32 %v418, 1.0
        %v429 = vadd.f32 %v420, 1.0
        %v430 = vadd.f32 %v422, 1.0
        %v431 = vrcp.pop %v423
        %v432 = vmul.f32 %v423, %v431
        %v433 = vsub.f32 1.0, %v432
        %v434 = vmul.f32 %v431, %v433
        %v435 = vadd.f32 %v431, %v434
        %vm436 = vweird.f32 %v423
        %vm437 = vweird.f32 %v431
        %vm438 = vmor %vm436, %vm437
        %v439 = vsel %vm438, %v431, %v435
        %v440 = vand.u32 2147483647, %v423
        %vm441 = vcmp.eq.f32.partialorder %v440, 8.507059e+37
        %v442 = vand.u32 %v423, 2147483648
        %v443 = vor.u32 1.1754944e-38, %v442
        %v444 = vsel %vm441, %v443, %v439
        %v445 = vmul.f32 1.0, %v444
        %v446 = vrcp.pop %v424
        %v447 = vmul.f32 %v424, %v446
        %v448 = vsub.f32 1.0, %v447
        %v449 = vmul.f32 %v446, %v448
        %v450 = vadd.f32 %v446, %v449
        %vm451 = vweird.f32 %v424
        %vm452 = vweird.f32 %v446
        %vm453 = vmor %vm451, %vm452
        %v454 = vsel %vm453, %v446, %v450
        %v455 = vand.u32 2147483647, %v424
        %vm456 = vcmp.eq.f32.partialorder %v455, 8.507059e+37
        %v457 = vand.u32 %v424, 2147483648
        %v458 = vor.u32 1.1754944e-38, %v457
        %v459 = vsel %vm456, %v458, %v454
        %v460 = vmul.f32 1.0, %v459
        %v461 = vrcp.pop %v425
        %v462 = vmul.f32 %v425, %v461
        %v463 = vsub.f32 1.0, %v462
        %v464 = vmul.f32 %v461, %v463
        %v465 = vadd.f32 %v461, %v464
        %vm466 = vweird.f32 %v425
        %vm467 = vweird.f32 %v461
        %vm468 = vmor %vm466, %vm467
        %v469 = vsel %vm468, %v461, %v465
        %v470 = vand.u32 2147483647, %v425
        %vm471 = vcmp.eq.f32.partialorder %v470, 8.507059e+37
        %v472 = vand.u32 %v425, 2147483648
        %v473 = vor.u32 1.1754944e-38, %v472
        %v474 = vsel %vm471, %v473, %v469
        %v475 = vmul.f32 1.0, %v474
        %v476 = vrcp.pop %v426
        %v477 = vmul.f32 %v426, %v476
        %v478 = vsub.f32 1.0, %v477
        %v479 = vmul.f32 %v476, %v478
        %v480 = vadd.f32 %v476, %v479
        %vm481 = vweird.f32 %v426
        %vm482 = vweird.f32 %v476
        %vm483 = vmor %vm481, %vm482
        %v484 = vsel %vm483, %v476, %v480
        %v485 = vand.u32 2147483647, %v426
        %vm486 = vcmp.eq.f32.partialorder %v485, 8.507059e+37
        %v487 = vand.u32 %v426, 2147483648
        %v488 = vor.u32 1.1754944e-38, %v487
        %v489 = vsel %vm486, %v488, %v484
        %v490 = vmul.f32 1.0, %v489
        %v491 = vrcp.pop %v427
        %v492 = vmul.f32 %v427, %v491
        %v493 = vsub.f32 1.0, %v492
        %v494 = vmul.f32 %v491, %v493
        %v495 = vadd.f32 %v491, %v494
        %vm496 = vweird.f32 %v427
        %vm497 = vweird.f32 %v491
        %vm498 = vmor %vm496, %vm497
        %v499 = vsel %vm498, %v491, %v495
        %v500 = vand.u32 2147483647, %v427
        %vm501 = vcmp.eq.f32.partialorder %v500, 8.507059e+37
        %v502 = vand.u32 %v427, 2147483648
        %v503 = vor.u32 1.1754944e-38, %v502
        %v504 = vsel %vm501, %v503, %v499
        %v505 = vmul.f32 1.0, %v504
        %v506 = vrcp.pop %v428
        %v507 = vmul.f32 %v428, %v506
        %v508 = vsub.f32 1.0, %v507
        %v509 = vmul.f32 %v506, %v508
        %v510 = vadd.f32 %v506, %v509
        %vm511 = vweird.f32 %v428
        %vm512 = vweird.f32 %v506
        %vm513 = vmor %vm511, %vm512
        %v514 = vsel %vm513, %v506, %v510
        %v515 = vand.u32 2147483647, %v428
        %vm516 = vcmp.eq.f32.partialorder %v515, 8.507059e+37
        %v517 = vand.u32 %v428, 2147483648
        %v518 = vor.u32 1.1754944e-38, %v517
        %v519 = vsel %vm516, %v518, %v514
        %v520 = vmul.f32 1.0, %v519
        %v521 = vrcp.pop %v429
        %v522 = vmul.f32 %v429, %v521
        %v523 = vsub.f32 1.0, %v522
        %v524 = vmul.f32 %v521, %v523
        %v525 = vadd.f32 %v521, %v524
        %vm526 = vweird.f32 %v429
        %vm527 = vweird.f32 %v521
        %vm528 = vmor %vm526, %vm527
        %v529 = vsel %vm528, %v521, %v525
        %v530 = vand.u32 2147483647, %v429
        %vm531 = vcmp.eq.f32.partialorder %v530, 8.507059e+37
        %v532 = vand.u32 %v429, 2147483648
        %v533 = vor.u32 1.1754944e-38, %v532
        %v534 = vsel %vm531, %v533, %v529
        %v535 = vmul.f32 1.0, %v534
        %v536 = vrcp.pop %v430
        %v537 = vmul.f32 %v430, %v536
        %v538 = vsub.f32 1.0, %v537
        %v539 = vmul.f32 %v536, %v538
        %v540 = vadd.f32 %v536, %v539
        %vm541 = vweird.f32 %v430
        %vm542 = vweird.f32 %v536
        %vm543 = vmor %vm541, %vm542
        %v544 = vsel %vm543, %v536, %v540
        %v545 = vand.u32 2147483647, %v430
        %vm546 = vcmp.eq.f32.partialorder %v545, 8.507059e+37
        %v547 = vand.u32 %v430, 2147483648
        %v548 = vor.u32 1.1754944e-38, %v547
        %v549 = vsel %vm546, %v548, %v544
        %v550 = vmul.f32 1.0, %v549
        %v551 = vmul.f32 %v376, %v445
        %v552 = vmul.f32 %v379, %v460
        %v553 = vmul.f32 %v382, %v475
        %v554 = vmul.f32 %v385, %v490
        %v555 = vmul.f32 %v388, %v505
        %v556 = vmul.f32 %v391, %v520
        %v557 = vmul.f32 %v394, %v535
        %v558 = vmul.f32 %v397, %v550
        %s559 = scalar_lea.vmem %s261, 16
        %v560 = vld [vmem:[%s559] sm:$0xff]
        %v561 = vld [vmem:[%s559 + $0x8] sm:$0xff]
        %562 = vmatpush.msra.mxu0 0.0
        %563 = vmatpush.msra.mxu0 0.0
        %564 = vmatpush.msra.mxu0 0.0
        %565 = vmatpush.msra.mxu0 0.0
        %566 = vmatpush.msra.mxu0 0.0
        %567 = vmatpush.msra.mxu0 0.0
        %568 = vmatpush.msra.mxu0 0.0
        %569 = vmatpush.msra.mxu0 0.0
        %570 = vmatpush.msra.mxu0 0.0
        %571 = vmatpush.msra.mxu0 0.0
        %572 = vmatpush.msra.mxu0 0.0
        %573 = vmatpush.msra.mxu0 0.0
        %574 = vmatpush.msra.mxu0 0.0
        %575 = vmatpush.msra.mxu0 0.0
        %576 = vmatpush.msra.mxu0 %v561
        %577 = vmatpush.msra.mxu0 %v560
        %578 = vmatmul.f32.gmra.mxu0 %v335
        %v579 = vpop.f32.mrf.mxu0
        %v580 = vadd.f32 %v296, %v579
        %581 = vmatmul.f32.gmra.mxu0 %v338
        %v582 = vpop.f32.mrf.mxu0
        %v583 = vadd.f32 %v301, %v582
        %584 = vmatmul.f32.gmra.mxu0 %v341
        %v585 = vpop.f32.mrf.mxu0
        %v586 = vadd.f32 %v306, %v585
        %587 = vmatmul.f32.gmra.mxu0 %v344
        %v588 = vpop.f32.mrf.mxu0
        %v589 = vadd.f32 %v311, %v588
        %590 = vmatmul.f32.gmra.mxu0 %v347
        %v591 = vpop.f32.mrf.mxu0
        %v592 = vadd.f32 %v316, %v591
        %593 = vmatmul.f32.gmra.mxu0 %v350
        %v594 = vpop.f32.mrf.mxu0
        %v595 = vadd.f32 %v321, %v594
        %596 = vmatmul.f32.gmra.mxu0 %v353
        %v597 = vpop.f32.mrf.mxu0
        %v598 = vadd.f32 %v326, %v597
        %599 = vmatmul.f32.gmra.mxu0 %v356
        %v600 = vpop.f32.mrf.mxu0
        %v601 = vadd.f32 %v331, %v600
        %602 = vdwg.mxu0
        %v603 = vxor.u32 %v580, 2147483648
        %v604 = vxor.u32 %v583, 2147483648
        %v605 = vxor.u32 %v586, 2147483648
        %v606 = vxor.u32 %v589, 2147483648
        %v607 = vxor.u32 %v592, 2147483648
        %v608 = vxor.u32 %v595, 2147483648
        %v609 = vxor.u32 %v598, 2147483648
        %v610 = vxor.u32 %v601, 2147483648
        %v611 = vmul.f32 %v603, 1.442695
        %v612 = vpow.pop %v611
        %v613 = vmul.f32 %v604, 1.442695
        %v614 = vpow.pop %v613
        %v615 = vmul.f32 %v605, 1.442695
        %v616 = vpow.pop %v615
        %v617 = vmul.f32 %v606, 1.442695
        %v618 = vpow.pop %v617
        %v619 = vmul.f32 %v607, 1.442695
        %v620 = vpow.pop %v619
        %v621 = vmul.f32 %v608, 1.442695
        %v622 = vpow.pop %v621
        %v623 = vmul.f32 %v609, 1.442695
        %v624 = vpow.pop %v623
        %v625 = vmul.f32 %v610, 1.442695
        %v626 = vpow.pop %v625
        %v627 = vadd.f32 %v612, 1.0
        %v628 = vadd.f32 %v614, 1.0
        %v629 = vadd.f32 %v616, 1.0
        %v630 = vadd.f32 %v618, 1.0
        %v631 = vadd.f32 %v620, 1.0
        %v632 = vadd.f32 %v622, 1.0
        %v633 = vadd.f32 %v624, 1.0
        %v634 = vadd.f32 %v626, 1.0
        %v635 = vrcp.pop %v627
        %v636 = vmul.f32 %v627, %v635
        %v637 = vsub.f32 1.0, %v636
        %v638 = vmul.f32 %v635, %v637
        %v639 = vadd.f32 %v635, %v638
        %vm640 = vweird.f32 %v627
        %vm641 = vweird.f32 %v635
        %vm642 = vmor %vm640, %vm641
        %v643 = vsel %vm642, %v635, %v639
        %v644 = vand.u32 2147483647, %v627
        %vm645 = vcmp.eq.f32.partialorder %v644, 8.507059e+37
        %v646 = vand.u32 %v627, 2147483648
        %v647 = vor.u32 1.1754944e-38, %v646
        %v648 = vsel %vm645, %v647, %v643
        %v649 = vmul.f32 1.0, %v648
        %v650 = vrcp.pop %v628
        %v651 = vmul.f32 %v628, %v650
        %v652 = vsub.f32 1.0, %v651
        %v653 = vmul.f32 %v650, %v652
        %v654 = vadd.f32 %v650, %v653
        %vm655 = vweird.f32 %v628
        %vm656 = vweird.f32 %v650
        %vm657 = vmor %vm655, %vm656
        %v658 = vsel %vm657, %v650, %v654
        %v659 = vand.u32 2147483647, %v628
        %vm660 = vcmp.eq.f32.partialorder %v659, 8.507059e+37
        %v661 = vand.u32 %v628, 2147483648
        %v662 = vor.u32 1.1754944e-38, %v661
        %v663 = vsel %vm660, %v662, %v658
        %v664 = vmul.f32 1.0, %v663
        %v665 = vrcp.pop %v629
        %v666 = vmul.f32 %v629, %v665
        %v667 = vsub.f32 1.0, %v666
        %v668 = vmul.f32 %v665, %v667
        %v669 = vadd.f32 %v665, %v668
        %vm670 = vweird.f32 %v629
        %vm671 = vweird.f32 %v665
        %vm672 = vmor %vm670, %vm671
        %v673 = vsel %vm672, %v665, %v669
        %v674 = vand.u32 2147483647, %v629
        %vm675 = vcmp.eq.f32.partialorder %v674, 8.507059e+37
        %v676 = vand.u32 %v629, 2147483648
        %v677 = vor.u32 1.1754944e-38, %v676
        %v678 = vsel %vm675, %v677, %v673
        %v679 = vmul.f32 1.0, %v678
        %v680 = vrcp.pop %v630
        %v681 = vmul.f32 %v630, %v680
        %v682 = vsub.f32 1.0, %v681
        %v683 = vmul.f32 %v680, %v682
        %v684 = vadd.f32 %v680, %v683
        %vm685 = vweird.f32 %v630
        %vm686 = vweird.f32 %v680
        %vm687 = vmor %vm685, %vm686
        %v688 = vsel %vm687, %v680, %v684
        %v689 = vand.u32 2147483647, %v630
        %vm690 = vcmp.eq.f32.partialorder %v689, 8.507059e+37
        %v691 = vand.u32 %v630, 2147483648
        %v692 = vor.u32 1.1754944e-38, %v691
        %v693 = vsel %vm690, %v692, %v688
        %v694 = vmul.f32 1.0, %v693
        %v695 = vrcp.pop %v631
        %v696 = vmul.f32 %v631, %v695
        %v697 = vsub.f32 1.0, %v696
        %v698 = vmul.f32 %v695, %v697
        %v699 = vadd.f32 %v695, %v698
        %vm700 = vweird.f32 %v631
        %vm701 = vweird.f32 %v695
        %vm702 = vmor %vm700, %vm701
        %v703 = vsel %vm702, %v695, %v699
        %v704 = vand.u32 2147483647, %v631
        %vm705 = vcmp.eq.f32.partialorder %v704, 8.507059e+37
        %v706 = vand.u32 %v631, 2147483648
        %v707 = vor.u32 1.1754944e-38, %v706
        %v708 = vsel %vm705, %v707, %v703
        %v709 = vmul.f32 1.0, %v708
        %v710 = vrcp.pop %v632
        %v711 = vmul.f32 %v632, %v710
        %v712 = vsub.f32 1.0, %v711
        %v713 = vmul.f32 %v710, %v712
        %v714 = vadd.f32 %v710, %v713
        %vm715 = vweird.f32 %v632
        %vm716 = vweird.f32 %v710
        %vm717 = vmor %vm715, %vm716
        %v718 = vsel %vm717, %v710, %v714
        %v719 = vand.u32 2147483647, %v632
        %vm720 = vcmp.eq.f32.partialorder %v719, 8.507059e+37
        %v721 = vand.u32 %v632, 2147483648
        %v722 = vor.u32 1.1754944e-38, %v721
        %v723 = vsel %vm720, %v722, %v718
        %v724 = vmul.f32 1.0, %v723
        %v725 = vrcp.pop %v633
        %v726 = vmul.f32 %v633, %v725
        %v727 = vsub.f32 1.0, %v726
        %v728 = vmul.f32 %v725, %v727
        %v729 = vadd.f32 %v725, %v728
        %vm730 = vweird.f32 %v633
        %vm731 = vweird.f32 %v725
        %vm732 = vmor %vm730, %vm731
        %v733 = vsel %vm732, %v725, %v729
        %v734 = vand.u32 2147483647, %v633
        %vm735 = vcmp.eq.f32.partialorder %v734, 8.507059e+37
        %v736 = vand.u32 %v633, 2147483648
        %v737 = vor.u32 1.1754944e-38, %v736
        %v738 = vsel %vm735, %v737, %v733
        %v739 = vmul.f32 1.0, %v738
        %v740 = vrcp.pop %v634
        %v741 = vmul.f32 %v634, %v740
        %v742 = vsub.f32 1.0, %v741
        %v743 = vmul.f32 %v740, %v742
        %v744 = vadd.f32 %v740, %v743
        %vm745 = vweird.f32 %v634
        %vm746 = vweird.f32 %v740
        %vm747 = vmor %vm745, %vm746
        %v748 = vsel %vm747, %v740, %v744
        %v749 = vand.u32 2147483647, %v634
        %vm750 = vcmp.eq.f32.partialorder %v749, 8.507059e+37
        %v751 = vand.u32 %v634, 2147483648
        %v752 = vor.u32 1.1754944e-38, %v751
        %v753 = vsel %vm750, %v752, %v748
        %v754 = vmul.f32 1.0, %v753
        %v755 = vmul.f32 %v580, %v649
        %v756 = vmul.f32 %v583, %v664
        %v757 = vmul.f32 %v586, %v679
        %v758 = vmul.f32 %v589, %v694
        %v759 = vmul.f32 %v592, %v709
        %v760 = vmul.f32 %v595, %v724
        %v761 = vmul.f32 %v598, %v739
        %v762 = vmul.f32 %v601, %v754
        %v763 = vld [vmem:[%s3] sm:$0xff]
        %v764 = vld [vmem:[%s3 + $0x8] sm:$0xff]
        %v765 = vld [vmem:[%s3 + $0x10] sm:$0xff]
        %v766 = vld [vmem:[%s3 + $0x18] sm:$0xff]
        %v767 = vld [vmem:[%s3 + $0x20] sm:$0xff]
        %v768 = vld [vmem:[%s3 + $0x28] sm:$0xff]
        %v769 = vld [vmem:[%s3 + $0x30] sm:$0xff]
        %v770 = vld [vmem:[%s3 + $0x38] sm:$0xff]
        %v771 = vld [vmem:[%s3 + $0x40] sm:$0xff]
        %v772 = vld [vmem:[%s3 + $0x48] sm:$0xff]
        %v773 = vld [vmem:[%s3 + $0x50] sm:$0xff]
        %v774 = vld [vmem:[%s3 + $0x58] sm:$0xff]
        %v775 = vld [vmem:[%s3 + $0x60] sm:$0xff]
        %v776 = vld [vmem:[%s3 + $0x68] sm:$0xff]
        %v777 = vld [vmem:[%s3 + $0x70] sm:$0xff]
        %v778 = vld [vmem:[%s3 + $0x78] sm:$0xff]
        %s779 = scalar_lea.vmem %s3, 128
        %v780 = vld [vmem:[%s779] sm:$0xff]
        %v781 = vld [vmem:[%s779 + $0x8] sm:$0xff]
        %v782 = vld [vmem:[%s779 + $0x10] sm:$0xff]
        %v783 = vld [vmem:[%s779 + $0x18] sm:$0xff]
        %v784 = vld [vmem:[%s779 + $0x20] sm:$0xff]
        %v785 = vld [vmem:[%s779 + $0x28] sm:$0xff]
        %v786 = vld [vmem:[%s779 + $0x30] sm:$0xff]
        %v787 = vld [vmem:[%s779 + $0x38] sm:$0xff]
        %v788 = vld [vmem:[%s779 + $0x40] sm:$0xff]
        %v789 = vld [vmem:[%s779 + $0x48] sm:$0xff]
        %v790 = vld [vmem:[%s779 + $0x50] sm:$0xff]
        %v791 = vld [vmem:[%s779 + $0x58] sm:$0xff]
        %v792 = vld [vmem:[%s779 + $0x60] sm:$0xff]
        %v793 = vld [vmem:[%s779 + $0x68] sm:$0xff]
        %v794 = vld [vmem:[%s779 + $0x70] sm:$0xff]
        %v795 = vld [vmem:[%s779 + $0x78] sm:$0xff]
        %vm796 = vcmask 523264
        %v798 = vsel %vm796, %v780, 0
        %v801 = vsel %vm796, %v781, 0
        %v804 = vsel %vm796, %v782, 0
        %v807 = vsel %vm796, %v783, 0
        %v810 = vsel %vm796, %v784, 0
        %v813 = vsel %vm796, %v785, 0
        %v816 = vsel %vm796, %v786, 0
        %v819 = vsel %vm796, %v787, 0
        %v822 = vsel %vm796, %v788, 0
        %v825 = vsel %vm796, %v789, 0
        %v828 = vsel %vm796, %v790, 0
        %v831 = vsel %vm796, %v791, 0
        %v834 = vsel %vm796, %v792, 0
        %v837 = vsel %vm796, %v793, 0
        %v840 = vsel %vm796, %v794, 0
        %v843 = vsel %vm796, %v795, 0
        %845 = vmatpush.msra.mxu0 0.0
        %846 = vmatpush.msra.mxu0 0.0
        %847 = vmatpush.msra.mxu0 0.0
        %848 = vmatpush.msra.mxu0 0.0
        %849 = vmatpush.msra.mxu0 0.0
        %850 = vmatpush.msra.mxu0 0.0
        %851 = vmatpush.msra.mxu0 0.0
        %852 = vmatpush.msra.mxu0 0.0
        %853 = vmatpush.msra.mxu0 %v762
        %854 = vmatpush.msra.mxu0 %v761
        %855 = vmatpush.msra.mxu0 %v760
        %856 = vmatpush.msra.mxu0 %v759
        %857 = vmatpush.msra.mxu0 %v758
        %858 = vmatpush.msra.mxu0 %v757
        %859 = vmatpush.msra.mxu0 %v756
        %860 = vmatpush.msra.mxu0 %v755
        %861 = vmatmul.f32.gmra.mxu0 %v798
        %v862 = vpop.f32.mrf.mxu0
        %v863 = vadd.f32 0.0, %v862
        %864 = vmatmul.f32.gmra.mxu0 %v801
        %v865 = vpop.f32.mrf.mxu0
        %v866 = vadd.f32 0.0, %v865
        %867 = vmatmul.f32.gmra.mxu0 %v804
        %v868 = vpop.f32.mrf.mxu0
        %v869 = vadd.f32 0.0, %v868
        %870 = vmatmul.f32.gmra.mxu0 %v807
        %v871 = vpop.f32.mrf.mxu0
        %v872 = vadd.f32 0.0, %v871
        %873 = vmatmul.f32.gmra.mxu0 %v810
        %v874 = vpop.f32.mrf.mxu0
        %v875 = vadd.f32 0.0, %v874
        %876 = vmatmul.f32.gmra.mxu0 %v813
        %v877 = vpop.f32.mrf.mxu0
        %v878 = vadd.f32 0.0, %v877
        %879 = vmatmul.f32.gmra.mxu0 %v816
        %v880 = vpop.f32.mrf.mxu0
        %v881 = vadd.f32 0.0, %v880
        %882 = vmatmul.f32.gmra.mxu0 %v819
        %v883 = vpop.f32.mrf.mxu0
        %v884 = vadd.f32 0.0, %v883
        %885 = vmatmul.f32.gmra.mxu0 %v822
        %v886 = vpop.f32.mrf.mxu0
        %v887 = vadd.f32 0.0, %v886
        %888 = vmatmul.f32.gmra.mxu0 %v825
        %v889 = vpop.f32.mrf.mxu0
        %v890 = vadd.f32 0.0, %v889
        %891 = vmatmul.f32.gmra.mxu0 %v828
        %v892 = vpop.f32.mrf.mxu0
        %v893 = vadd.f32 0.0, %v892
        %894 = vmatmul.f32.gmra.mxu0 %v831
        %v895 = vpop.f32.mrf.mxu0
        %v896 = vadd.f32 0.0, %v895
        %897 = vmatmul.f32.gmra.mxu0 %v834
        %v898 = vpop.f32.mrf.mxu0
        %v899 = vadd.f32 0.0, %v898
        %900 = vmatmul.f32.gmra.mxu0 %v837
        %v901 = vpop.f32.mrf.mxu0
        %v902 = vadd.f32 0.0, %v901
        %903 = vmatmul.f32.gmra.mxu0 %v840
        %v904 = vpop.f32.mrf.mxu0
        %v905 = vadd.f32 0.0, %v904
        %906 = vmatmul.f32.gmra.mxu0 %v843
        %v907 = vpop.f32.mrf.mxu0
        %v908 = vadd.f32 0.0, %v907
        %909 = vdwg.mxu0
        %v911 = vsel %vm796, %v763, 0
        %v914 = vsel %vm796, %v764, 0
        %v917 = vsel %vm796, %v765, 0
        %v920 = vsel %vm796, %v766, 0
        %v923 = vsel %vm796, %v767, 0
        %v926 = vsel %vm796, %v768, 0
        %v929 = vsel %vm796, %v769, 0
        %v932 = vsel %vm796, %v770, 0
        %v935 = vsel %vm796, %v771, 0
        %v938 = vsel %vm796, %v772, 0
        %v941 = vsel %vm796, %v773, 0
        %v944 = vsel %vm796, %v774, 0
        %v947 = vsel %vm796, %v775, 0
        %v950 = vsel %vm796, %v776, 0
        %v953 = vsel %vm796, %v777, 0
        %v956 = vsel %vm796, %v778, 0
        %958 = vmatpush.msra.mxu0 0.0
        %959 = vmatpush.msra.mxu0 0.0
        %960 = vmatpush.msra.mxu0 0.0
        %961 = vmatpush.msra.mxu0 0.0
        %962 = vmatpush.msra.mxu0 0.0
        %963 = vmatpush.msra.mxu0 0.0
        %964 = vmatpush.msra.mxu0 0.0
        %965 = vmatpush.msra.mxu0 0.0
        %966 = vmatpush.msra.mxu0 %v558
        %967 = vmatpush.msra.mxu0 %v557
        %968 = vmatpush.msra.mxu0 %v556
        %969 = vmatpush.msra.mxu0 %v555
        %970 = vmatpush.msra.mxu0 %v554
        %971 = vmatpush.msra.mxu0 %v553
        %972 = vmatpush.msra.mxu0 %v552
        %973 = vmatpush.msra.mxu0 %v551
        %974 = vmatmul.f32.gmra.mxu0 %v911
        %v975 = vpop.f32.mrf.mxu0
        %v976 = vadd.f32 %v863, %v975
        %977 = vmatmul.f32.gmra.mxu0 %v914
        %v978 = vpop.f32.mrf.mxu0
        %v979 = vadd.f32 %v866, %v978
        %980 = vmatmul.f32.gmra.mxu0 %v917
        %v981 = vpop.f32.mrf.mxu0
        %v982 = vadd.f32 %v869, %v981
        %983 = vmatmul.f32.gmra.mxu0 %v920
        %v984 = vpop.f32.mrf.mxu0
        %v985 = vadd.f32 %v872, %v984
        %986 = vmatmul.f32.gmra.mxu0 %v923
        %v987 = vpop.f32.mrf.mxu0
        %v988 = vadd.f32 %v875, %v987
        %989 = vmatmul.f32.gmra.mxu0 %v926
        %v990 = vpop.f32.mrf.mxu0
        %v991 = vadd.f32 %v878, %v990
        %992 = vmatmul.f32.gmra.mxu0 %v929
        %v993 = vpop.f32.mrf.mxu0
        %v994 = vadd.f32 %v881, %v993
        %995 = vmatmul.f32.gmra.mxu0 %v932
        %v996 = vpop.f32.mrf.mxu0
        %v997 = vadd.f32 %v884, %v996
        %998 = vmatmul.f32.gmra.mxu0 %v935
        %v999 = vpop.f32.mrf.mxu0
        %v1000 = vadd.f32 %v887, %v999
        %1001 = vmatmul.f32.gmra.mxu0 %v938
        %v1002 = vpop.f32.mrf.mxu0
        %v1003 = vadd.f32 %v890, %v1002
        %1004 = vmatmul.f32.gmra.mxu0 %v941
        %v1005 = vpop.f32.mrf.mxu0
        %v1006 = vadd.f32 %v893, %v1005
        %1007 = vmatmul.f32.gmra.mxu0 %v944
        %v1008 = vpop.f32.mrf.mxu0
        %v1009 = vadd.f32 %v896, %v1008
        %1010 = vmatmul.f32.gmra.mxu0 %v947
        %v1011 = vpop.f32.mrf.mxu0
        %v1012 = vadd.f32 %v899, %v1011
        %1013 = vmatmul.f32.gmra.mxu0 %v950
        %v1014 = vpop.f32.mrf.mxu0
        %v1015 = vadd.f32 %v902, %v1014
        %1016 = vmatmul.f32.gmra.mxu0 %v953
        %v1017 = vpop.f32.mrf.mxu0
        %v1018 = vadd.f32 %v905, %v1017
        %1019 = vmatmul.f32.gmra.mxu0 %v956
        %v1020 = vpop.f32.mrf.mxu0
        %v1021 = vadd.f32 %v908, %v1020
        %1022 = vdwg.mxu0
        %1023 = vst [vmem:[%s253] sm:$0xff] %v976
        %1024 = vst [vmem:[%s253 + $0x8] sm:$0xff] %v979
        %1025 = vst [vmem:[%s253 + $0x10] sm:$0xff] %v982
        %1026 = vst [vmem:[%s253 + $0x18] sm:$0xff] %v985
        %1027 = vst [vmem:[%s253 + $0x20] sm:$0xff] %v988
        %1028 = vst [vmem:[%s253 + $0x28] sm:$0xff] %v991
        %1029 = vst [vmem:[%s253 + $0x30] sm:$0xff] %v994
        %1030 = vst [vmem:[%s253 + $0x38] sm:$0xff] %v997
        %1031 = vst [vmem:[%s253 + $0x40] sm:$0xff] %v1000
        %1032 = vst [vmem:[%s253 + $0x48] sm:$0xff] %v1003
        %1033 = vst [vmem:[%s253 + $0x50] sm:$0xff] %v1006
        %1034 = vst [vmem:[%s253 + $0x58] sm:$0xff] %v1009
        %1035 = vst [vmem:[%s253 + $0x60] sm:$0xff] %v1012
        %1036 = vst [vmem:[%s253 + $0x68] sm:$0xff] %v1015
        %1037 = vst [vmem:[%s253 + $0x70] sm:$0xff] %v1018
        %1038 = vst [vmem:[%s253 + $0x78] sm:$0xff] %v1021
        %s1039 = sand.u32 %s150, 1
        %s1040 = scalar_lea.sflag [#allocation3], %s1039
        %s1041 = sand.u32 %s150, 1
        %s1042 = smul.addr %s1041, 128
        %s1043 = scalar_lea.vmem [#allocation2], %s1042
        // Predicated region
        $region37: #{tpu_custom_call.1} parent=35 // pred_check
          %p1044 = pneg %p160
        $region38: #{tpu_custom_call.1} parent=35 // pred_check_branch
          %1046 = sbr.rel (%p1044) target = $region40
        $region39: #{tpu_custom_call.1} parent=35 // pred_region
          %s1047 = smul.u32 16, %s24
          %1049 = vsyncadd %s1040, 0
          %s1050 = sadd.s32 %s25, %s1047
          %s1051 = smul.addr %s23, 16
          %s1052 = sadd.s32 %s1050, %s1051
          %s1053 = smul.addr %s1052, 8
          %s1054 = scalar_lea.hbm %s4, %s1053
          %s1055 = sshll.u32 %s1043, 4
          %s1056 = int_to_ptr.vmem [resolvable:$true] %s1055
          %s1057 = sshll.u32 %s1054, 4
          %s1058 = int_to_ptr.hbm [resolvable:$true] %s1057
          %1063 = dma.vmem_to_hbm [thread:$0]  %s1056, 2048, %s1058, %s1040, 128, 128, 8
        $region40: #{tpu_custom_call.1} parent=35 // pred_fallthru
          _
      $region36: #{tpu_custom_call.1} parent=5 // pred_fallthru
        _
      %p1064 = scmp.le.s32.totalorder 2, %s13
      // Predicated region
      $region41: #{tpu_custom_call.1} parent=5 // pred_check
        %p1065 = pneg %p1064
      $region42: #{tpu_custom_call.1} parent=5 // pred_check_branch
        %1067 = sbr.rel (%p1065) target = $region44
      $region43: #{tpu_custom_call.1} parent=5 // pred_region
        %s1068 = ssub.s32 %s13, 2
        // Predicated region
        $region45: #{tpu_custom_call.1} parent=43 // pred_check
          %p1069 = pneg %p166
        $region46: #{tpu_custom_call.1} parent=43 // pred_check_branch
          %1071 = sbr.rel (%p1069) target = $region48
        $region47: #{tpu_custom_call.1} parent=43 // pred_region
          %s1072 = sand.u32 %s151, 1
          %s1073 = scalar_lea.sflag [#allocation3], %s1072
          %s1074 = sand.u32 %s151, 1
          %s1075 = smul.addr %s1074, 128
          %s1076 = scalar_lea.vmem [#allocation2], %s1075
          %1078 = dma.done %s1073, 2048
        $region48: #{tpu_custom_call.1} parent=43 // pred_fallthru
          _
      $region44: #{tpu_custom_call.1} parent=5 // pred_fallthru
        _
    $region6: #{tpu_custom_call.1} parent=1 // loop_footer
      %s17 = sadd.s32 1, %s13
    $region7: #{tpu_custom_call.1} parent=1 // loop_footer_branch
      %12 = sbr.rel target = $region3
    $region8: #{tpu_custom_call.1} parent=1 // loop_exit
      _
    %1079 = vsyncpa [#allocation3], 1
    %s1080 = scalar_lea.sflag [#allocation3], 1
    %1081 = vsyncpa %s1080, 1

</llo_original>
